<compile_context>
chip_gen: v6e
topology: v6e:2x2x1
jax: 0.10.0
libtpu: 0.0.40
codegen_flags: <defaults>
</compile_context>

<pallas_src>
import functools

import jax
import jax.numpy as jnp
from jax import lax
from jax.experimental import pallas as pl
from jax.experimental.pallas import tpu as pltpu

_MIB = 1024 * 1024


def _round_up(x, m):
    return ((x + m - 1) // m) * m


def _sublane(dtype):
    # f32 -> 8, bf16 -> 16, int8/fp8 -> 32 rows per sublane tile.
    return max(8, 32 // max(1, jnp.dtype(dtype).itemsize))


def _vmem_capacity_bytes():
    try:
        fn = getattr(pltpu, "get_tpu_info", None)
        if fn is not None:
            cap = getattr(fn(), "vmem_capacity_bytes", None)
            if cap:
                return int(cap)
    except Exception:
        pass
    return 64 * _MIB  # conservative fallback (v7x-sized)


def _est_vmem(rt, tp, d_model, win, x_bytes, w_bytes):
    return (2 * tp * d_model * x_bytes          # double-buffered activation blocks
            + 2 * rt * d_model * x_bytes        # double-buffered output blocks
            + 2 * win * d_model * d_model * w_bytes  # resident folded weight (x2 bufs)
            + 4 * rt * d_model * 4              # f32 temporaries (acc, out, xf, xf^2)
            + tp * d_model * 4                  # headroom for strided-read temporaries
            + 8 * d_model * 4)                  # wsum / bias


def _pick_rt(requested, n_rows, win, d_model, x_bytes, w_bytes, sub, budget):
    rt = max(sub, _round_up(min(requested, max(n_rows, 1)), sub))
    while rt > sub and _est_vmem(rt, rt * win, d_model, win, x_bytes, w_bytes) > budget:
        rt = max(sub, _round_up(rt // 2, sub))
    return rt


def _effective_rt(n_rows, rt, sub):
    r = min(rt, n_rows)
    if r < n_rows:
        r = _round_up(r, sub)
        if r >= n_rows:
            r = n_rows
    # Keep >= 2 grid steps when there is enough work (DMA pipeline + 2 TCs on v7x).
    if r == n_rows and n_rows > 2 * sub:
        half = _round_up(pl.cdiv(n_rows, 2), sub)
        if half < n_rows:
            r = half
    return r


# --------------------------------------------------------------------------- #
# Kernel: rt merged rows from win*rt (or more) consecutive patch rows.
#   x_ref    : (TP, d_model)   patches, groups of `win` rows form one merged row
#   w_ref    : (win, d_model, d_model)  gamma-folded weight
#   wsum_ref : (1, d_model)    column sums of the folded weight (f32)
#   b_ref    : (1, d_model)    beta @ W + bias (f32)
#   o_ref    : (rt, d_model)
# --------------------------------------------------------------------------- #
def _seg_merge_kernel(x_ref, w_ref, wsum_ref, b_ref, o_ref, *, eps):
    rt, d_model = o_ref.shape
    win = w_ref.shape[0]
    d2 = win * d_model

    acc = jnp.zeros((rt, d_model), jnp.float32)
    s1 = jnp.zeros((rt, 1), jnp.float32)
    s2 = jnp.zeros((rt, 1), jnp.float32)
    for i in range(win):  # static unroll, win is small (2 in the paper)
        # Strided sublane read: patch rows i, i+win, i+2*win, ...
        xi = x_ref[pl.ds(i, rt, stride=win), :]
        xf = xi.astype(jnp.float32)
        s1 = s1 + jnp.sum(xf, axis=-1, keepdims=True)
        s2 = s2 + jnp.sum(xf * xf, axis=-1, keepdims=True)
        acc = acc + jnp.dot(xi.astype(w_ref.dtype), w_ref[i],
                            preferred_element_type=jnp.float32)

    mean = s1 * (1.0 / d2)
    var = jnp.maximum(s2 * (1.0 / d2) - mean * mean, 0.0)
    inv = lax.rsqrt(var + eps)
    out = acc * inv - (mean * inv) * wsum_ref[...] + b_ref[...]
    o_ref[...] = out.astype(o_ref.dtype)


def _compiler_params(grid_rank, est, cap):
    vmem_limit = int(min(cap - 16 * _MIB, max(16 * _MIB, 2 * est)))
    return pltpu.CompilerParams(
        dimension_semantics=("parallel",) * grid_rank,
        vmem_limit_bytes=vmem_limit,
    )


def _cost(n_rows, win, d_model, x_bytes, w_bytes, in_rows):
    return pl.CostEstimate(
        flops=2 * n_rows * win * d_model * d_model + 8 * n_rows * win * d_model,
        transcendentals=n_rows,
        bytes_accessed=(in_rows * d_model * x_bytes + n_rows * d_model * x_bytes
                        + win * d_model * d_model * w_bytes + 8 * d_model),
    )


def _run_flat(flat, n_rows, w3, wsum, b_fold, *, out_dtype, eps, requested, sub,
              budget, cap):
    """flat: (n_rows*win, d_model) patch rows; returns (n_rows, d_model)."""
    win, d_model, _ = w3.shape
    x_bytes, w_bytes = flat.dtype.itemsize, w3.dtype.itemsize
    rt = _pick_rt(requested, n_rows, win, d_model, x_bytes, w_bytes, sub, budget)
    rt = _effective_rt(n_rows, rt, sub)
    tp = rt * win  # == flat.shape[0] when rt == n_rows (equal-full block)
    grid = (pl.cdiv(n_rows, rt),)
    est = _est_vmem(rt, tp, d_model, win, x_bytes, w_bytes)

    return pl.pallas_call(
        functools.partial(_seg_merge_kernel, eps=eps),
        out_shape=jax.ShapeDtypeStruct((n_rows, d_model), out_dtype),
        grid_spec=pltpu.PrefetchScalarGridSpec(
            num_scalar_prefetch=0,
            grid=grid,
            in_specs=[
                pl.BlockSpec((tp, d_model), lambda i: (i, 0)),
                pl.BlockSpec((win, d_model, d_model), lambda i: (0, 0, 0)),
                pl.BlockSpec((1, d_model), lambda i: (0, 0)),
                pl.BlockSpec((1, d_model), lambda i: (0, 0)),
            ],
            out_specs=pl.BlockSpec((rt, d_model), lambda i: (i, 0)),
        ),
        compiler_params=_compiler_params(1, est, cap),
        cost_estimate=_cost(n_rows, win, d_model, x_bytes, w_bytes, n_rows * win),
    )(flat, w3, wsum, b_fold)


def _run_batched(x, q, w3, wsum, b_fold, *, out_dtype, eps, requested, sub,
                 budget, cap):
    """Complete merged rows of the padded case, reading x in its native layout.

    x: (bc, patch_num, d_model); returns (bc, q, d_model) with q = patch_num//win.
    """
    bc, patch_num, d_model = x.shape
    win = w3.shape[0]
    x_bytes, w_bytes = x.dtype.itemsize, w3.dtype.itemsize
    rt = _pick_rt(requested, q, win, d_model, x_bytes, w_bytes, sub, budget)
    rt = min(rt, q)
    if rt < q:
        rt = max(sub, _round_up(rt, sub))
        if rt >= q:
            rt = q
    # When a single block per batch covers all complete rows, use the full patch
    # extent so the block shape satisfies the "equal full dim" rule.
    tp = rt * win if rt < q else patch_num
    grid = (bc, pl.cdiv(q, rt))
    est = _est_vmem(rt, tp, d_model, win, x_bytes, w_bytes)
    n_rows = bc * q

    return pl.pallas_call(
        functools.partial(_seg_merge_kernel, eps=eps),
        out_shape=jax.ShapeDtypeStruct((bc, q, d_model), out_dtype),
        grid_spec=pltpu.PrefetchScalarGridSpec(
            num_scalar_prefetch=0,
            grid=grid,
            in_specs=[
                pl.BlockSpec((None, tp, d_model), lambda b, j: (b, j, 0)),
                pl.BlockSpec((win, d_model, d_model), lambda b, j: (0, 0, 0)),
                pl.BlockSpec((1, d_model), lambda b, j: (0, 0)),
                pl.BlockSpec((1, d_model), lambda b, j: (0, 0)),
            ],
            out_specs=pl.BlockSpec((None, rt, d_model), lambda b, j: (b, j, 0)),
        ),
        compiler_params=_compiler_params(2, est, cap),
        cost_estimate=_cost(n_rows, win, d_model, x_bytes, w_bytes, bc * patch_num),
    )(x, w3, wsum, b_fold)


def seg_merging(x, params, *, win_size, eps=1e-5, row_tile=1024):
    """Crossformer SegMerging forward.

    x: (bc, patch_num, d_model) -> (bc, ceil(patch_num / win_size), d_model)
    params: (gamma, beta, w_t, bias); gamma/beta: (win*d_model,),
            w_t: (win*d_model, d_model) (nn.Linear weight transposed), bias: (d_model,)
    """
    gamma, beta, w_t, bias = params
    bc, patch_num, d_model = x.shape
    win = win_size

    # Fold LayerNorm affine into the linear layer (once, in f32):
    #   (xn*gamma + beta) @ W + b == xn @ (gamma[:,None]*W) + (beta @ W + b)
    # and keep the column sums of the folded weight for post-matmul normalization.
    w_f32 = w_t.astype(jnp.float32)
    w_fold = (gamma.astype(jnp.float32)[:, None] * w_f32).astype(w_t.dtype)
    w3 = w_fold.reshape(win, d_model, d_model)                       # free reshape
    wsum = jnp.sum(w_fold.astype(jnp.float32), axis=0).reshape(1, d_model)
    b_fold = (beta.astype(jnp.float32) @ w_f32
              + bias.astype(jnp.float32)).reshape(1, d_model)

    cap = _vmem_capacity_bytes()
    budget = max(16 * _MIB, int(0.70 * cap))     # ~45 MiB v7x, ~90 MiB v5e/v6e
    sub = _sublane(x.dtype)
    common = dict(out_dtype=x.dtype, eps=eps, requested=row_tile, sub=sub,
                  budget=budget, cap=cap)

    r = patch_num % win
    if r == 0:
        # torch's strided-slice + cat(-1) is exactly a row-major reshape, so the
        # flat patch view is free and every merged row is win consecutive patches.
        merged = patch_num // win
        flat = x.reshape(bc * patch_num, d_model)
        out = _run_flat(flat, bc * merged, w3, wsum, b_fold, **common)
        return out.reshape(bc, merged, d_model)

    # ---- padded case: no full-tensor concat copy ----------------------------
    q = patch_num // win            # complete merged segments per batch
    pad_num = win - r
    pieces = []
    if q > 0:
        pieces.append(_run_batched(x, q, w3, wsum, b_fold, **common))
    # Tail segment per batch: the last r patches + the repeated last pad_num
    # patches (tiny (bc, win, d_model) copy, matches torch.cat semantics).
    tail_src = jnp.concatenate(
        [x[:, q * win:patch_num, :], x[:, patch_num - pad_num:patch_num, :]], axis=1)
    tail_flat = tail_src.reshape(bc * win, d_model)
    tail = _run_flat(tail_flat, bc, w3, wsum, b_fold, **common)
    pieces.append(tail.reshape(bc, 1, d_model))
    return jnp.concatenate(pieces, axis=1) if len(pieces) > 1 else pieces[0]


# --------------------------------------------------------------------------- #
# Reference + test harness
# --------------------------------------------------------------------------- #
def _reference(x, params, *, win_size, eps=1e-5):
    gamma, beta, w_t, bias = params
    pad_num = x.shape[1] % win_size
    if pad_num != 0:
        pad_num = win_size - pad_num
        x = jnp.concatenate([x, x[:, -pad_num:, :]], axis=-2)
    segs = [x[:, i::win_size, :] for i in range(win_size)]
    m = jnp.concatenate(segs, axis=-1).astype(jnp.float32)
    mean = jnp.mean(m, axis=-1, keepdims=True)
    var = jnp.mean((m - mean) ** 2, axis=-1, keepdims=True)
    y = (m - mean) * lax.rsqrt(var + eps) * gamma.astype(jnp.float32) \
        + beta.astype(jnp.float32)
    out = y @ w_t.astype(jnp.float32) + bias.astype(jnp.float32)
    return out.astype(x.dtype)


def init_params(key, d_model, win_size, dtype=jnp.float32):
    d2 = win_size * d_model
    k1, k2, k3, k4 = jax.random.split(key, 4)
    gamma = (1.0 + 0.1 * jax.random.normal(k3, (d2,))).astype(dtype)
    beta = (0.1 * jax.random.normal(k4, (d2,))).astype(dtype)
    bound = 1.0 / float(d2) ** 0.5
    w_t = jax.random.uniform(k1, (d2, d_model), dtype, -bound, bound)
    bias = jax.random.uniform(k2, (d_model,), dtype, -bound, bound)
    return gamma, beta, w_t, bias


def _check(bc, patch_num, d_model, win_size, key):
    kx, kp = jax.random.split(key)
    x = jax.random.normal(kx, (bc, patch_num, d_model), jnp.float32)
    params = init_params(kp, d_model, win_size)
    out = jax.block_until_ready(seg_merging(x, params, win_size=win_size))
    ref = _reference(x, params, win_size=win_size)
    assert out.shape == ref.shape, (out.shape, ref.shape)
    err = float(jnp.max(jnp.abs(out - ref)))
    assert jnp.allclose(out, ref, atol=2e-4, rtol=2e-4), f"mismatch, max err {err}"


if __name__ == "__main__":
    key = jax.random.PRNGKey(0)
    k1, k2, k3 = jax.random.split(key, 3)

    # Padded case: exercises the copy-free batched main call + tiny tail call.
    _check(bc=6, patch_num=7, d_model=32, win_size=2, key=k1)

    # No-pad, win_size=4, lane-dense (d_model=128): single-block flat call.
    _check(bc=4, patch_num=16, d_model=128, win_size=4, key=k2)

    # No-pad, larger: multi-step grid on the flat path.
    _check(bc=8, patch_num=64, d_model=128, win_size=2, key=k3)

    print("KERNEL_OK")
</pallas_src>

<mosaic_0001>
module attributes {stable_mosaic.version = 11 : i64} {
  func.func @_seg_merge_kernel(%arg0: i32, %arg1: i32, %arg2: memref<1x7x32xf32, #tpu.memory_space<vmem>>, %arg3: memref<2x32x32xf32, #tpu.memory_space<vmem>>, %arg4: memref<1x32xf32, #tpu.memory_space<vmem>>, %arg5: memref<1x32xf32, #tpu.memory_space<vmem>>, %arg6: memref<1x3x32xf32, #tpu.memory_space<vmem>>) attributes {dimension_semantics = [#tpu.dimension_semantics<parallel>, #tpu.dimension_semantics<parallel>], iteration_bounds = array<i64: 6, 1>, scalar_prefetch = 0 : i64, scratch_operands = 0 : i64, tpu.core_type = #tpu.core_type<tc>, window_params = [{transform_indices = @transform_0, window_bounds = array<i64: 1, 7, 32>}, {pipeline_mode = #tpu.pipeline_mode<synchronous>, transform_indices = @transform_1, window_bounds = array<i64: 2, 32, 32>}, {pipeline_mode = #tpu.pipeline_mode<synchronous>, transform_indices = @transform_2, window_bounds = array<i64: 1, 32>}, {pipeline_mode = #tpu.pipeline_mode<synchronous>, transform_indices = @transform_3, window_bounds = array<i64: 1, 32>}, {transform_indices = @transform_4, window_bounds = array<i64: 1, 3, 32>}]} {
    %cst = arith.constant 0.000000e+00 : f32
    %0 = vector.broadcast %cst : f32 to vector<3x32xf32>
    %cst_0 = arith.constant 0.000000e+00 : f32
    %1 = vector.broadcast %cst_0 : f32 to vector<3x1xf32>
    %cst_1 = arith.constant 0.000000e+00 : f32
    %2 = vector.broadcast %cst_1 : f32 to vector<3x1xf32>
    %c0 = arith.constant 0 : index
    %c0_2 = arith.constant 0 : index
    %c0_3 = arith.constant 0 : index
    %3 = tpu.strided_load %arg2[%c0, %c0_2, %c0_3] {strides = array<i32: 1, 2, 1>} : memref<1x7x32xf32, #tpu.memory_space<vmem>>, vector<1x3x32xf32>
    %4 = vector.shape_cast %3 : vector<1x3x32xf32> to vector<3x32xf32>
    %cst_4 = arith.constant dense<0.000000e+00> : vector<3xf32>
    %5 = vector.multi_reduction <add>, %4, %cst_4 [1] : vector<3x32xf32> to vector<3xf32>
    %6 = vector.shape_cast %5 : vector<3xf32> to vector<3x1xf32>
    %7 = arith.addf %1, %6 : vector<3x1xf32>
    %8 = arith.mulf %4, %4 : vector<3x32xf32>
    %cst_5 = arith.constant dense<0.000000e+00> : vector<3xf32>
    %9 = vector.multi_reduction <add>, %8, %cst_5 [1] : vector<3x32xf32> to vector<3xf32>
    %10 = vector.shape_cast %9 : vector<3xf32> to vector<3x1xf32>
    %11 = arith.addf %2, %10 : vector<3x1xf32>
    %c0_6 = arith.constant 0 : index
    %c0_7 = arith.constant 0 : index
    %c0_8 = arith.constant 0 : index
    %12 = vector.load %arg3[%c0_6, %c0_7, %c0_8] : memref<2x32x32xf32, #tpu.memory_space<vmem>>, vector<1x32x32xf32>
    %13 = vector.shape_cast %12 : vector<1x32x32xf32> to vector<32x32xf32>
    %cst_9 = arith.constant dense<0.000000e+00> : vector<3x32xf32>
    %14 = tpu.matmul %4, %13, %cst_9 {dimension_numbers = #tpu.dot_dimension_numbers<[1], [0], [0], [1], [0, 0, 1, 1], [], []>} : vector<3x32xf32>, vector<32x32xf32>, vector<3x32xf32> -> vector<3x32xf32>
    %15 = arith.addf %0, %14 : vector<3x32xf32>
    %c0_10 = arith.constant 0 : index
    %c1 = arith.constant 1 : index
    %c0_11 = arith.constant 0 : index
    %16 = tpu.strided_load %arg2[%c0_10, %c1, %c0_11] {strides = array<i32: 1, 2, 1>} : memref<1x7x32xf32, #tpu.memory_space<vmem>>, vector<1x3x32xf32>
    %17 = vector.shape_cast %16 : vector<1x3x32xf32> to vector<3x32xf32>
    %cst_12 = arith.constant dense<0.000000e+00> : vector<3xf32>
    %18 = vector.multi_reduction <add>, %17, %cst_12 [1] : vector<3x32xf32> to vector<3xf32>
    %19 = vector.shape_cast %18 : vector<3xf32> to vector<3x1xf32>
    %20 = arith.addf %7, %19 : vector<3x1xf32>
    %21 = arith.mulf %17, %17 : vector<3x32xf32>
    %cst_13 = arith.constant dense<0.000000e+00> : vector<3xf32>
    %22 = vector.multi_reduction <add>, %21, %cst_13 [1] : vector<3x32xf32> to vector<3xf32>
    %23 = vector.shape_cast %22 : vector<3xf32> to vector<3x1xf32>
    %24 = arith.addf %11, %23 : vector<3x1xf32>
    %c1_14 = arith.constant 1 : index
    %c0_15 = arith.constant 0 : index
    %c0_16 = arith.constant 0 : index
    %25 = vector.load %arg3[%c1_14, %c0_15, %c0_16] : memref<2x32x32xf32, #tpu.memory_space<vmem>>, vector<1x32x32xf32>
    %26 = vector.shape_cast %25 : vector<1x32x32xf32> to vector<32x32xf32>
    %cst_17 = arith.constant dense<0.000000e+00> : vector<3x32xf32>
    %27 = tpu.matmul %17, %26, %cst_17 {dimension_numbers = #tpu.dot_dimension_numbers<[1], [0], [0], [1], [0, 0, 1, 1], [], []>} : vector<3x32xf32>, vector<32x32xf32>, vector<3x32xf32> -> vector<3x32xf32>
    %28 = arith.addf %15, %27 : vector<3x32xf32>
    %cst_18 = arith.constant 1.562500e-02 : f32
    %29 = vector.broadcast %cst_18 : f32 to vector<3x1xf32>
    %30 = arith.mulf %20, %29 : vector<3x1xf32>
    %cst_19 = arith.constant 1.562500e-02 : f32
    %31 = vector.broadcast %cst_19 : f32 to vector<3x1xf32>
    %32 = arith.mulf %24, %31 : vector<3x1xf32>
    %33 = arith.mulf %30, %30 : vector<3x1xf32>
    %34 = arith.subf %32, %33 : vector<3x1xf32>
    %cst_20 = arith.constant 0.000000e+00 : f32
    %35 = vector.broadcast %cst_20 : f32 to vector<3x1xf32>
    %36 = arith.maximumf %34, %35 : vector<3x1xf32>
    %cst_21 = arith.constant 9.99999974E-6 : f32
    %37 = vector.broadcast %cst_21 : f32 to vector<3x1xf32>
    %38 = arith.addf %36, %37 : vector<3x1xf32>
    %39 = math.rsqrt %38 : vector<3x1xf32>
    %40 = vector.broadcast %39 : vector<3x1xf32> to vector<3x32xf32>
    %41 = arith.mulf %28, %40 : vector<3x32xf32>
    %42 = arith.mulf %30, %39 : vector<3x1xf32>
    %c0_22 = arith.constant 0 : index
    %c0_23 = arith.constant 0 : index
    %43 = vector.load %arg4[%c0_22, %c0_23] : memref<1x32xf32, #tpu.memory_space<vmem>>, vector<1x32xf32>
    %44 = vector.broadcast %42 : vector<3x1xf32> to vector<3x32xf32>
    %45 = vector.broadcast %43 : vector<1x32xf32> to vector<3x32xf32>
    %46 = arith.mulf %44, %45 : vector<3x32xf32>
    %47 = arith.subf %41, %46 : vector<3x32xf32>
    %c0_24 = arith.constant 0 : index
    %c0_25 = arith.constant 0 : index
    %48 = vector.load %arg5[%c0_24, %c0_25] : memref<1x32xf32, #tpu.memory_space<vmem>>, vector<1x32xf32>
    %49 = vector.broadcast %48 : vector<1x32xf32> to vector<3x32xf32>
    %50 = arith.addf %47, %49 : vector<3x32xf32>
    %c0_26 = arith.constant 0 : index
    %c0_27 = arith.constant 0 : index
    %c0_28 = arith.constant 0 : index
    %51 = vector.load %arg6[%c0_26, %c0_27, %c0_28] : memref<1x3x32xf32, #tpu.memory_space<vmem>>, vector<1x3x32xf32>
    %52 = vector.shape_cast %51 : vector<1x3x32xf32> to vector<3x32xf32>
    %53 = vector.shape_cast %50 : vector<3x32xf32> to vector<1x3x32xf32>
    tpu.vector_store %arg6[%c0_26, %c0_27, %c0_28], %53 {strides = array<i32>} : memref<1x3x32xf32, #tpu.memory_space<vmem>>, vector<1x3x32xf32>,
    return
  }
  func.func @transform_0(%arg0: i32, %arg1: i32) -> (i32, i32, i32) {
    %c0_i32 = arith.constant 0 : i32
    %c0_i32_0 = arith.constant 0 : i32
    return %arg0, %arg1, %c0_i32 : i32, i32, i32
  }
  func.func @transform_1(%arg0: i32, %arg1: i32) -> (i32, i32, i32) {
    %c0_i32 = arith.constant 0 : i32
    %c0_i32_0 = arith.constant 0 : i32
    %c0_i32_1 = arith.constant 0 : i32
    %c0_i32_2 = arith.constant 0 : i32
    return %c0_i32, %c0_i32_0, %c0_i32_1 : i32, i32, i32
  }
  func.func @transform_2(%arg0: i32, %arg1: i32) -> (i32, i32) {
    %c0_i32 = arith.constant 0 : i32
    %c0_i32_0 = arith.constant 0 : i32
    %c0_i32_1 = arith.constant 0 : i32
    return %c0_i32, %c0_i32_0 : i32, i32
  }
  func.func @transform_3(%arg0: i32, %arg1: i32) -> (i32, i32) {
    %c0_i32 = arith.constant 0 : i32
    %c0_i32_0 = arith.constant 0 : i32
    %c0_i32_1 = arith.constant 0 : i32
    return %c0_i32, %c0_i32_0 : i32, i32
  }
  func.func @transform_4(%arg0: i32, %arg1: i32) -> (i32, i32, i32) {
    %c0_i32 = arith.constant 0 : i32
    %c0_i32_0 = arith.constant 0 : i32
    return %arg0, %arg1, %c0_i32 : i32, i32, i32
  }
}

</mosaic_0001>

<llo_original>
// kernel: tpu_custom_call.1
$region0: #{tpu_custom_call.1}
  #allocation0 [shape = 'u32[]', space=smem, size = 0x4, offset = 0x4, fixed_abs, tag = 'smem constant byte address 0x4 - core index']
  #allocation1 [shape = 'u32[144,128]{1,0:T(1,128)}', space=vmem, size = 0x12000, scoped, tag = 'internal scratch']
  %s0 = inlined_call_operand.hbm [shape: f32[6,7,32], index: 0, kind: input, shape index: {}]
  %s1 = inlined_call_operand.hbm [shape: f32[2,32,32], index: 1, kind: input, shape index: {}]
  %s2 = inlined_call_operand.vmem [shape: f32[1,32], index: 2, kind: input, shape index: {}]
  %s3 = inlined_call_operand.vmem [shape: f32[1,32], index: 3, kind: input, shape index: {}]
  %s4 = inlined_call_operand.hbm [shape: f32[6,3,32], index: 4, kind: output, shape index: {}]
  %s5 = sld [smem:[#allocation0]]
  $region57: #{tpu_custom_call.1} parent=0
    _
  %s7 = ssub.s32 1, %s5
  %s8 = scalar_select 0, %s7, %s5
  $region1: #{tpu_custom_call.1} parent=0
    #allocation2 [shape = 'u8[8192]{0}', space=vmem, size = 0x2000, scoped, tag = 'input window, operand 0']
    #allocation3 [shape = 's32[2]{0}', space=sflag, size = 0x8, scoped, tag = 'scoped memory for tpu_custom_call.1']
    #allocation4 [shape = 's32[2]{0}', space=sflag, size = 0x8, scoped, tag = 'scoped memory for tpu_custom_call.1']
    #allocation5 [shape = 'u8[32768]{0}', space=vmem, size = 0x8000, scoped, tag = 'input window, operand 1, single buffered']
    #allocation6 [shape = 's32[1]{0}', space=sflag, size = 0x4, scoped, tag = 'scoped memory for tpu_custom_call.1']
    #allocation7 [shape = 'u8[4096]{0}', space=vmem, size = 0x1000, scoped, tag = 'output window, operand 0']
    %9 = vsyncpa [#allocation3], 0
    %s10 = scalar_lea.sflag [#allocation3], 1
    %11 = vsyncpa %s10, 0
    %12 = vsyncpa [#allocation6], 0
    %13 = vsyncpa [#allocation4], 0
    %s14 = scalar_lea.sflag [#allocation4], 1
    %15 = vsyncpa %s14, 0
    loop: start=0, step=1, limit=8
    $region2: #{tpu_custom_call.1} parent=1 // loop_pre_header
      _
    $region3: #{tpu_custom_call.1} parent=1 // loop_header
      %s17 = sphi 0, %s21
      %p18 = scmp.ge.s32.totalorder %s17, 8
      %s24 = sphi 0, %s36
      %s25 = sphi 0, %s32
      %s26 = sphi 0, %s24
      %s27 = sphi 0, %s25
      %s28 = sphi 0, %s26
      %s29 = sphi 0, %s27
      %s41 = sphi 0, %s43
      %s44 = sphi 0, %s41
      %s45 = sphi 0, %s44
      %s61 = sphi 0, %s45
      %s65 = sphi 0, %s65
      %s67 = sphi 0, %s65
      %s68 = sphi 0, %s67
      %s82 = sphi 0, %s68
      %s86 = sphi 0, %s86
      %s88 = sphi 0, %s86
      %s89 = sphi 0, %s88
      %s103 = sphi 0, %s89
      %s107 = sphi 0, %s107
      %s109 = sphi 0, %s107
      %s110 = sphi 0, %s109
      %s124 = sphi 0, %s110
      %s132 = sphi 0, %s134
      %s135 = sphi 0, %s132
      %s136 = sphi 0, %s135
      %s152 = sphi 0, %s136
    $region4: #{tpu_custom_call.1} parent=1 // loop_header_branch
      %20 = sbr.rel (%p18) target = $region8
    $region5: #{tpu_custom_call.1} parent=1 // loop_body
      %s22 = ssub.s32 %s17, 1
      %s23 = ssub.s32 %s17, 2
      %s30 = sadd.s32 1, %s25
      %p31 = scmp.ge.s32.totalorder %s30, 1
      %s32 = scalar_select %p31, 0, %s30
      %s33 = sadd.s32 1, %s24
      %s34 = scalar_select %p31, %s33, %s24
      %p35 = scmp.ge.s32.totalorder %s34, 6
      %s36 = scalar_select %p35, 0, %s34
      %s37 = ssub.s32 %s24, %s36
      %s38 = ssub.s32 %s25, %s32
      %s39 = sor.u32 %s37, %s38
      %p40 = scmp.eq.s32.totalorder %s39, 0
      %s42 = sadd.s32 %s41, 1
      %s43 = scalar_select %p40, %s41, %s42
      %p46 = pneg %p40
      %p47 = scmp.eq.s32.totalorder %s17, 5
      %p48 = por %p46, %p47
      %p49 = scmp.ne.s32.totalorder %s41, %s44
      %p50 = scmp.eq.s32.totalorder %s17, 0
      %p51 = por %p49, %p50
      %p52 = scmp.ne.s32.totalorder %s41, %s44
      %p53 = scmp.eq.s32.totalorder %s22, 5
      %p54 = por %p52, %p53
      %p55 = scmp.ne.s32.totalorder %s44, %s45
      %p56 = scmp.eq.s32.totalorder %s22, 0
      %p57 = por %p55, %p56
      %p58 = scmp.ne.s32.totalorder %s44, %s45
      %p59 = scmp.eq.s32.totalorder %s23, 5
      %p60 = por %p58, %p59
      %p62 = scmp.ne.s32.totalorder %s45, %s61
      %p63 = scmp.eq.s32.totalorder %s23, 0
      %p64 = por %p62, %p63
      %s66 = sadd.s32 %s65, 1
      %p69 = scmp.eq.s32.totalorder %s17, 5
      %p70 = scmp.ne.s32.totalorder %s65, %s67
      %p71 = scmp.eq.s32.totalorder %s17, 0
      %p72 = por %p70, %p71
      %p73 = scmp.ne.s32.totalorder %s65, %s67
      %p74 = scmp.eq.s32.totalorder %s22, 5
      %p75 = por %p73, %p74
      %p76 = scmp.ne.s32.totalorder %s67, %s68
      %p77 = scmp.eq.s32.totalorder %s22, 0
      %p78 = por %p76, %p77
      %p79 = scmp.ne.s32.totalorder %s67, %s68
      %p80 = scmp.eq.s32.totalorder %s23, 5
      %p81 = por %p79, %p80
      %p83 = scmp.ne.s32.totalorder %s68, %s82
      %p84 = scmp.eq.s32.totalorder %s23, 0
      %p85 = por %p83, %p84
      %s87 = sadd.s32 %s86, 1
      %p90 = scmp.eq.s32.totalorder %s17, 5
      %p91 = scmp.ne.s32.totalorder %s86, %s88
      %p92 = scmp.eq.s32.totalorder %s17, 0
      %p93 = por %p91, %p92
      %p94 = scmp.ne.s32.totalorder %s86, %s88
      %p95 = scmp.eq.s32.totalorder %s22, 5
      %p96 = por %p94, %p95
      %p97 = scmp.ne.s32.totalorder %s88, %s89
      %p98 = scmp.eq.s32.totalorder %s22, 0
      %p99 = por %p97, %p98
      %p100 = scmp.ne.s32.totalorder %s88, %s89
      %p101 = scmp.eq.s32.totalorder %s23, 5
      %p102 = por %p100, %p101
      %p104 = scmp.ne.s32.totalorder %s89, %s103
      %p105 = scmp.eq.s32.totalorder %s23, 0
      %p106 = por %p104, %p105
      %s108 = sadd.s32 %s107, 1
      %p111 = scmp.eq.s32.totalorder %s17, 5
      %p112 = scmp.ne.s32.totalorder %s107, %s109
      %p113 = scmp.eq.s32.totalorder %s17, 0
      %p114 = por %p112, %p113
      %p115 = scmp.ne.s32.totalorder %s107, %s109
      %p116 = scmp.eq.s32.totalorder %s22, 5
      %p117 = por %p115, %p116
      %p118 = scmp.ne.s32.totalorder %s109, %s110
      %p119 = scmp.eq.s32.totalorder %s22, 0
      %p120 = por %p118, %p119
      %p121 = scmp.ne.s32.totalorder %s109, %s110
      %p122 = scmp.eq.s32.totalorder %s23, 5
      %p123 = por %p121, %p122
      %p125 = scmp.ne.s32.totalorder %s110, %s124
      %p126 = scmp.eq.s32.totalorder %s23, 0
      %p127 = por %p125, %p126
      %s128 = ssub.s32 %s24, %s36
      %s129 = ssub.s32 %s25, %s32
      %s130 = sor.u32 %s128, %s129
      %p131 = scmp.eq.s32.totalorder %s130, 0
      %s133 = sadd.s32 %s132, 1
      %s134 = scalar_select %p131, %s132, %s133
      %p137 = pneg %p131
      %p138 = scmp.eq.s32.totalorder %s17, 5
      %p139 = por %p137, %p138
      %p140 = scmp.ne.s32.totalorder %s132, %s135
      %p141 = scmp.eq.s32.totalorder %s17, 0
      %p142 = por %p140, %p141
      %p143 = scmp.ne.s32.totalorder %s132, %s135
      %p144 = scmp.eq.s32.totalorder %s22, 5
      %p145 = por %p143, %p144
      %p146 = scmp.ne.s32.totalorder %s135, %s136
      %p147 = scmp.eq.s32.totalorder %s22, 0
      %p148 = por %p146, %p147
      %p149 = scmp.ne.s32.totalorder %s135, %s136
      %p150 = scmp.eq.s32.totalorder %s23, 5
      %p151 = por %p149, %p150
      %p153 = scmp.ne.s32.totalorder %s136, %s152
      %p154 = scmp.eq.s32.totalorder %s23, 0
      %p155 = por %p153, %p154
      %p156 = scmp.le.s32.totalorder 1, %s17
      %p157 = scmp.lt.s32.totalorder %s17, 7
      %p158 = pnand %p156, %p157
      %p159 = pneg %p158
      // Predicated region
      $region9: #{tpu_custom_call.1} parent=5 // pred_check
        _
      $region10: #{tpu_custom_call.1} parent=5 // pred_check_branch
        %161 = sbr.rel (%p158) target = $region12
      $region11: #{tpu_custom_call.1} parent=5 // pred_region
        %s162 = ssub.s32 %s17, 1
        // Predicated region
        $region13: #{tpu_custom_call.1} parent=11 // pred_check
          %p163 = pneg %p78
        $region14: #{tpu_custom_call.1} parent=11 // pred_check_branch
          %165 = sbr.rel (%p163) target = $region16
        $region15: #{tpu_custom_call.1} parent=11 // pred_region
          %s167 = ssub.s32 1024, 1024
          %168 = vsyncadd [#allocation6], %s167
          %s169 = sshll.u32 [#allocation5], 4
          %s170 = int_to_ptr.vmem [resolvable:$true] %s169
          %175 = dma.hbm_to_vmem [thread:$0]  %s1, 1024, %s170, [#allocation6], 128, 128, 8
        $region16: #{tpu_custom_call.1} parent=11 // pred_fallthru
          _
        // Predicated region
        $region17: #{tpu_custom_call.1} parent=11 // pred_check
          %p176 = pneg %p99
        $region18: #{tpu_custom_call.1} parent=11 // pred_check_branch
          %178 = sbr.rel (%p176) target = $region20
        $region19: #{tpu_custom_call.1} parent=11 // pred_region
          _
        $region20: #{tpu_custom_call.1} parent=11 // pred_fallthru
          _
        // Predicated region
        $region21: #{tpu_custom_call.1} parent=11 // pred_check
          %p179 = pneg %p120
        $region22: #{tpu_custom_call.1} parent=11 // pred_check_branch
          %181 = sbr.rel (%p179) target = $region24
        $region23: #{tpu_custom_call.1} parent=11 // pred_region
          _
        $region24: #{tpu_custom_call.1} parent=11 // pred_fallthru
          _
      $region12: #{tpu_custom_call.1} parent=5 // pred_fallthru
        _
      %p182 = scmp.lt.s32.totalorder %s17, 6
      // Predicated region
      $region25: #{tpu_custom_call.1} parent=5 // pred_check
        %p183 = pneg %p182
      $region26: #{tpu_custom_call.1} parent=5 // pred_check_branch
        %185 = sbr.rel (%p183) target = $region28
      $region27: #{tpu_custom_call.1} parent=5 // pred_region
        // Predicated region
        $region29: #{tpu_custom_call.1} parent=27 // pred_check
          %p186 = pneg %p51
        $region30: #{tpu_custom_call.1} parent=27 // pred_check_branch
          %188 = sbr.rel (%p186) target = $region32
        $region31: #{tpu_custom_call.1} parent=27 // pred_region
          %s189 = sand.u32 %s41, 1
          %s190 = scalar_lea.sflag [#allocation3], %s189
          %s191 = sand.u32 %s41, 1
          %s192 = smul.addr %s191, 8
          %s193 = scalar_lea.vmem [#allocation2], %s192
          %s195 = ssub.s32 128, 128
          %196 = vsyncadd %s190, %s195
          %s197 = sadd.s32 %s25, %s24
          %s198 = smul.addr %s197, 128
          %s199 = scalar_lea.hbm %s0, %s198
          %s201 = sshll.u32 %s193, 4
          %s202 = int_to_ptr.vmem [resolvable:$true] %s201
          %204 = dma.hbm_to_vmem [thread:$0]  %s199, 128, %s202, %s190
        $region32: #{tpu_custom_call.1} parent=27 // pred_fallthru
          _
      $region28: #{tpu_custom_call.1} parent=5 // pred_fallthru
        _
      %p205 = scmp.le.s32.totalorder 1, %s17
      %p206 = scmp.lt.s32.totalorder %s17, 7
      %p207 = pnand %p205, %p206
      %p208 = pneg %p207
      // Predicated region
      $region33: #{tpu_custom_call.1} parent=5 // pred_check
        _
      $region34: #{tpu_custom_call.1} parent=5 // pred_check_branch
        %210 = sbr.rel (%p207) target = $region36
      $region35: #{tpu_custom_call.1} parent=5 // pred_region
        %s211 = ssub.s32 %s17, 1
        %s212 = sand.u32 %s44, 1
        %s213 = scalar_lea.sflag [#allocation3], %s212
        %s214 = sand.u32 %s44, 1
        %s215 = smul.addr %s214, 8
        %s216 = scalar_lea.vmem [#allocation2], %s215
        // Predicated region
        $region37: #{tpu_custom_call.1} parent=35 // pred_check
          %p217 = pneg %p57
        $region38: #{tpu_custom_call.1} parent=35 // pred_check_branch
          %219 = sbr.rel (%p217) target = $region40
        $region39: #{tpu_custom_call.1} parent=35 // pred_region
          %220 = dma.done %s213, 128
        $region40: #{tpu_custom_call.1} parent=35 // pred_fallthru
          _
        // Predicated region
        $region41: #{tpu_custom_call.1} parent=35 // pred_check
          %p221 = pneg %p78
        $region42: #{tpu_custom_call.1} parent=35 // pred_check_branch
          %223 = sbr.rel (%p221) target = $region44
        $region43: #{tpu_custom_call.1} parent=35 // pred_region
          %224 = dma.done [#allocation6], 1024
        $region44: #{tpu_custom_call.1} parent=35 // pred_fallthru
          _
        %s225 = sand.u32 %s44, 1
        %s226 = scalar_lea.sflag [#allocation3], %s225
        %s227 = sand.u32 %s44, 1
        %s228 = smul.addr %s227, 8
        %s229 = scalar_lea.vmem [#allocation2], %s228
        %p230 = pneg %p57
        %p231 = pneg %p54
        %p232 = pneg %p78
        %p233 = pneg %p75
        %p234 = pneg %p99
        %p235 = pneg %p96
        %p236 = pneg %p120
        %p237 = pneg %p117
        %p238 = pneg %p148
        %p239 = pneg %p145
        %s240 = sand.u32 %s135, 1
        %s241 = scalar_lea.sflag [#allocation4], %s240
        %s242 = sand.u32 %s135, 1
        %s243 = smul.addr %s242, 4
        %s244 = scalar_lea.vmem [#allocation7], %s243
        %v245 = vld [vmem:[%s216] ss:$2 sm:$0x7]
        %vm246 = vcmask 256000
        %v247 = vsel %vm246, %v245, 0.0
        %248 = vadd.xlane.f32.xlu0 %v247
        %v249 = vpop.xlane.xlu0 %248
        %v250 = vadd.f32 %v249, 0.0
        %v251 = vmul.f32 %v245, %v245
        %v252 = vsel %vm246, %v251, 0.0
        %253 = vadd.xlane.f32.xlu0 %v252
        %v254 = vpop.xlane.xlu0 %253
        %v255 = vadd.f32 %v254, 0.0
        %v256 = vld [vmem:[#allocation5] sm:$0xff]
        %v257 = vld [vmem:[#allocation5 + $0x8] sm:$0xff]
        %v258 = vld [vmem:[#allocation5 + $0x10] sm:$0xff]
        %v259 = vld [vmem:[#allocation5 + $0x18] sm:$0xff]
        %s260 = scalar_lea.vmem %s216, 1 [#allocation2]
        %v261 = vld [vmem:[%s260] ss:$2 sm:$0x7]
        %v262 = vsel %vm246, %v261, 0.0
        %263 = vadd.xlane.f32.xlu0 %v262
        %v264 = vpop.xlane.xlu0 %263
        %v265 = vadd.f32 %v250, %v264
        %v266 = vmul.f32 %v261, %v261
        %v267 = vsel %vm246, %v266, 0.0
        %268 = vadd.xlane.f32.xlu0 %v267
        %v269 = vpop.xlane.xlu0 %268
        %v270 = vadd.f32 %v255, %v269
        %s271 = scalar_lea.vmem [#allocation5], 32
        %v272 = vld [vmem:[%s271] sm:$0xff]
        %v273 = vld [vmem:[%s271 + $0x8] sm:$0xff]
        %v274 = vld [vmem:[%s271 + $0x10] sm:$0xff]
        %v275 = vld [vmem:[%s271 + $0x18] sm:$0xff]
        %vm276 = vcmask 261120
        %v278 = vsel %vm276, %v261, 0
        %280 = vmatprep.subr.mxu0 0.0
        %281 = vmatpush1.msra.mxu0 0.0
        %282 = vmatprep.subr.mxu0 0.0
        %283 = vmatpush1.msra.mxu0 0.0
        %284 = vmatprep.subr.mxu0 0.0
        %285 = vmatpush1.msra.mxu0 0.0
        %286 = vmatprep.subr.mxu0 0.0
        %287 = vmatpush1.msra.mxu0 0.0
        %288 = vmatprep.subr.mxu0 0.0
        %289 = vmatpush1.msra.mxu0 0.0
        %290 = vmatprep.subr.mxu0 0.0
        %291 = vmatpush1.msra.mxu0 0.0
        %292 = vmatprep.subr.mxu0 0.0
        %293 = vmatpush1.msra.mxu0 0.0
        %294 = vmatprep.subr.mxu0 0.0
        %295 = vmatpush1.msra.mxu0 0.0
        %296 = vmatprep.subr.mxu0 0.0
        %297 = vmatpush1.msra.mxu0 0.0
        %298 = vmatprep.subr.mxu0 0.0
        %299 = vmatpush1.msra.mxu0 0.0
        %300 = vmatprep.subr.mxu0 0.0
        %301 = vmatpush1.msra.mxu0 0.0
        %302 = vmatprep.subr.mxu0 0.0
        %303 = vmatpush1.msra.mxu0 0.0
        %304 = vmatprep.subr.mxu0 0.0
        %305 = vmatpush1.msra.mxu0 %v275
        %306 = vmatprep.subr.mxu0 0.0
        %307 = vmatpush1.msra.mxu0 %v274
        %308 = vmatprep.subr.mxu0 0.0
        %309 = vmatpush1.msra.mxu0 %v273
        %310 = vmatprep.subr.mxu0 0.0
        %311 = vmatpush1.msra.mxu0 %v272
        %312 = vmatprep.subr.mxu0 0.0
        %313 = vmatpush2.msra.mxu0 0.0
        %314 = vmatprep.subr.mxu0 0.0
        %315 = vmatpush2.msra.mxu0 0.0
        %316 = vmatprep.subr.mxu0 0.0
        %317 = vmatpush2.msra.mxu0 0.0
        %318 = vmatprep.subr.mxu0 0.0
        %319 = vmatpush2.msra.mxu0 0.0
        %320 = vmatprep.subr.mxu0 0.0
        %321 = vmatpush2.msra.mxu0 0.0
        %322 = vmatprep.subr.mxu0 0.0
        %323 = vmatpush2.msra.mxu0 0.0
        %324 = vmatprep.subr.mxu0 0.0
        %325 = vmatpush2.msra.mxu0 0.0
        %326 = vmatprep.subr.mxu0 0.0
        %327 = vmatpush2.msra.mxu0 0.0
        %328 = vmatprep.subr.mxu0 0.0
        %329 = vmatpush2.msra.mxu0 0.0
        %330 = vmatprep.subr.mxu0 0.0
        %331 = vmatpush2.msra.mxu0 0.0
        %332 = vmatprep.subr.mxu0 0.0
        %333 = vmatpush2.msra.mxu0 0.0
        %334 = vmatprep.subr.mxu0 0.0
        %335 = vmatpush2.msra.mxu0 0.0
        %336 = vmatprep.subr.mxu0 0.0
        %337 = vmatpush2.msra.mxu0 0.0
        %338 = vmatprep.subr.mxu0 0.0
        %339 = vmatpush2.msra.mxu0 0.0
        %340 = vmatprep.subr.mxu0 0.0
        %341 = vmatpush2.msra.mxu0 0.0
        %342 = vmatprep.subr.mxu0 0.0
        %343 = vmatpush2.msra.mxu0 0.0
        %344 = vmatprep.mubr.f32.mxu0 0.0
        %345 = vmatmul.mubr.f32.gmra.mxu0 %v278
        %v346 = vpop.f32.mrf.mxu0
        %v347 = vadd.f32 0.0, %v346
        %v348 = vpop.f32.mrf.mxu0
        %349 = vdwg.mxu0
        %v351 = vsel %vm276, %v245, 0
        %353 = vmatprep.subr.mxu0 0.0
        %354 = vmatpush1.msra.mxu0 0.0
        %355 = vmatprep.subr.mxu0 0.0
        %356 = vmatpush1.msra.mxu0 0.0
        %357 = vmatprep.subr.mxu0 0.0
        %358 = vmatpush1.msra.mxu0 0.0
        %359 = vmatprep.subr.mxu0 0.0
        %360 = vmatpush1.msra.mxu0 0.0
        %361 = vmatprep.subr.mxu0 0.0
        %362 = vmatpush1.msra.mxu0 0.0
        %363 = vmatprep.subr.mxu0 0.0
        %364 = vmatpush1.msra.mxu0 0.0
        %365 = vmatprep.subr.mxu0 0.0
        %366 = vmatpush1.msra.mxu0 0.0
        %367 = vmatprep.subr.mxu0 0.0
        %368 = vmatpush1.msra.mxu0 0.0
        %369 = vmatprep.subr.mxu0 0.0
        %370 = vmatpush1.msra.mxu0 0.0
        %371 = vmatprep.subr.mxu0 0.0
        %372 = vmatpush1.msra.mxu0 0.0
        %373 = vmatprep.subr.mxu0 0.0
        %374 = vmatpush1.msra.mxu0 0.0
        %375 = vmatprep.subr.mxu0 0.0
        %376 = vmatpush1.msra.mxu0 0.0
        %377 = vmatprep.subr.mxu0 0.0
        %378 = vmatpush1.msra.mxu0 %v259
        %379 = vmatprep.subr.mxu0 0.0
        %380 = vmatpush1.msra.mxu0 %v258
        %381 = vmatprep.subr.mxu0 0.0
        %382 = vmatpush1.msra.mxu0 %v257
        %383 = vmatprep.subr.mxu0 0.0
        %384 = vmatpush1.msra.mxu0 %v256
        %385 = vmatprep.subr.mxu0 0.0
        %386 = vmatpush2.msra.mxu0 0.0
        %387 = vmatprep.subr.mxu0 0.0
        %388 = vmatpush2.msra.mxu0 0.0
        %389 = vmatprep.subr.mxu0 0.0
        %390 = vmatpush2.msra.mxu0 0.0
        %391 = vmatprep.subr.mxu0 0.0
        %392 = vmatpush2.msra.mxu0 0.0
        %393 = vmatprep.subr.mxu0 0.0
        %394 = vmatpush2.msra.mxu0 0.0
        %395 = vmatprep.subr.mxu0 0.0
        %396 = vmatpush2.msra.mxu0 0.0
        %397 = vmatprep.subr.mxu0 0.0
        %398 = vmatpush2.msra.mxu0 0.0
        %399 = vmatprep.subr.mxu0 0.0
        %400 = vmatpush2.msra.mxu0 0.0
        %401 = vmatprep.subr.mxu0 0.0
        %402 = vmatpush2.msra.mxu0 0.0
        %403 = vmatprep.subr.mxu0 0.0
        %404 = vmatpush2.msra.mxu0 0.0
        %405 = vmatprep.subr.mxu0 0.0
        %406 = vmatpush2.msra.mxu0 0.0
        %407 = vmatprep.subr.mxu0 0.0
        %408 = vmatpush2.msra.mxu0 0.0
        %409 = vmatprep.subr.mxu0 0.0
        %410 = vmatpush2.msra.mxu0 0.0
        %411 = vmatprep.subr.mxu0 0.0
        %412 = vmatpush2.msra.mxu0 0.0
        %413 = vmatprep.subr.mxu0 0.0
        %414 = vmatpush2.msra.mxu0 0.0
        %415 = vmatprep.subr.mxu0 0.0
        %416 = vmatpush2.msra.mxu0 0.0
        %417 = vmatprep.mubr.f32.mxu0 0.0
        %418 = vmatmul.mubr.f32.gmra.mxu0 %v351
        %v419 = vpop.f32.mrf.mxu0
        %v420 = vadd.f32 %v347, %v419
        %v421 = vpop.f32.mrf.mxu0
        %422 = vdwg.mxu0
        %v423 = vmul.f32 %v265, 0.015625
        %v424 = vmul.f32 %v270, 0.015625
        %v425 = vmul.f32 %v423, %v423
        %v426 = vsub.f32 %v424, %v425
        %v427 = vmax.f32 %v426, 0.0
        %v428 = vadd.f32 %v427, 1e-05
        %v429 = vrsqrt.pop %v428
        %v430 = vmul.f32 %v420, %v429
        %v431 = vmul.f32 %v423, %v429
        %v432 = vld [vmem:[%s2] sm:$0x1]
        %v434 = vlaneseq
        %v435 = vshrl.u32 %v434, 7
        %v436 = vsub.s32 0, %v435
        %v437 = vrot.slane %v432, %v436
        %v439 = vmul.f32 %v431, %v437
        %v440 = vsub.f32 %v430, %v439
        %v441 = vld [vmem:[%s3] sm:$0x1]
        %v443 = vlaneseq
        %v444 = vshrl.u32 %v443, 7
        %v445 = vsub.s32 0, %v444
        %v446 = vrot.slane %v441, %v445
        %v448 = vadd.f32 %v440, %v446
        %449 = vst.msk [vmem:[%s244] sm:$0x7] %vm246, %v448
        %s450 = sand.u32 %s135, 1
        %s451 = scalar_lea.sflag [#allocation4], %s450
        %s452 = sand.u32 %s135, 1
        %s453 = smul.addr %s452, 4
        %s454 = scalar_lea.vmem [#allocation7], %s453
        // Predicated region
        $region45: #{tpu_custom_call.1} parent=35 // pred_check
          %p455 = pneg %p145
        $region46: #{tpu_custom_call.1} parent=35 // pred_check_branch
          %457 = sbr.rel (%p455) target = $region48
        $region47: #{tpu_custom_call.1} parent=35 // pred_region
          %s459 = ssub.s32 64, 64
          %460 = vsyncadd %s451, %s459
          %s461 = sadd.s32 %s27, %s26
          %s462 = smul.addr %s461, 64
          %s463 = scalar_lea.hbm %s4, %s462
          %s465 = sshll.u32 %s454, 4
          %s466 = int_to_ptr.vmem [resolvable:$true] %s465
          %468 = dma.vmem_to_hbm [thread:$0]  %s466, 64, %s463, %s451
        $region48: #{tpu_custom_call.1} parent=35 // pred_fallthru
          _
      $region36: #{tpu_custom_call.1} parent=5 // pred_fallthru
        _
      %p469 = scmp.le.s32.totalorder 2, %s17
      // Predicated region
      $region49: #{tpu_custom_call.1} parent=5 // pred_check
        %p470 = pneg %p469
      $region50: #{tpu_custom_call.1} parent=5 // pred_check_branch
        %472 = sbr.rel (%p470) target = $region52
      $region51: #{tpu_custom_call.1} parent=5 // pred_region
        %s473 = ssub.s32 %s17, 2
        // Predicated region
        $region53: #{tpu_custom_call.1} parent=51 // pred_check
          %p474 = pneg %p151
        $region54: #{tpu_custom_call.1} parent=51 // pred_check_branch
          %476 = sbr.rel (%p474) target = $region56
        $region55: #{tpu_custom_call.1} parent=51 // pred_region
          %s477 = sand.u32 %s136, 1
          %s478 = scalar_lea.sflag [#allocation4], %s477
          %s479 = sand.u32 %s136, 1
          %s480 = smul.addr %s479, 4
          %s481 = scalar_lea.vmem [#allocation7], %s480
          %482 = dma.done %s478, 64
        $region56: #{tpu_custom_call.1} parent=51 // pred_fallthru
          _
      $region52: #{tpu_custom_call.1} parent=5 // pred_fallthru
        _
    $region6: #{tpu_custom_call.1} parent=1 // loop_footer
      %s21 = sadd.s32 1, %s17
    $region7: #{tpu_custom_call.1} parent=1 // loop_footer_branch
      %16 = sbr.rel target = $region3
    $region8: #{tpu_custom_call.1} parent=1 // loop_exit
      _
    %483 = vsyncpa [#allocation3], 1
    %s484 = scalar_lea.sflag [#allocation3], 1
    %485 = vsyncpa %s484, 1
    %486 = vsyncpa [#allocation6], 1
    %487 = vsyncpa [#allocation4], 1
    %s488 = scalar_lea.sflag [#allocation4], 1
    %489 = vsyncpa %s488, 1

</llo_original>
